<compile_context>
chip_gen: v6e
topology: v6e:2x2x1
jax: 0.10.0
libtpu: 0.0.40
codegen_flags: <defaults>
</compile_context>

<pallas_src>
import jax
import jax.numpy as jnp
from jax.experimental import pallas as pl
from jax.experimental.pallas import tpu as pltpu


# ----------------------------------------------------------------------------
# Plain-JAX glue: bilinear decomposition (F.grid_sample semantics,
# mode='bilinear', padding_mode='zeros', align_corners=False, grid = 2*p - 1)
# ----------------------------------------------------------------------------
def _bilinear_indices_and_weights(points, H, W):
    """points: (B, N, 2) with (x, y) in [0, 1].
    Returns flat spatial indices (B, 4, N) int32 and f32 weights (B, 4, N);
    grid_sample's zero padding is folded into the weights via the (unclipped)
    in-bounds mask."""
    x = points[..., 0] * W - 0.5            # align_corners=False pixel coords
    y = points[..., 1] * H - 0.5
    x0 = jnp.floor(x)
    y0 = jnp.floor(y)
    x1 = x0 + 1.0
    y1 = y0 + 1.0
    wx1 = x - x0
    wx0 = 1.0 - wx1
    wy1 = y - y0
    wy0 = 1.0 - wy1

    def inb(xi, yi):
        return ((xi >= 0) & (xi <= W - 1) & (yi >= 0) & (yi <= H - 1)).astype(jnp.float32)

    # corner order: (y0,x0), (y0,x1), (y1,x0), (y1,x1)
    weights = jnp.stack(
        [wy0 * wx0 * inb(x0, y0),
         wy0 * wx1 * inb(x1, y0),
         wy1 * wx0 * inb(x0, y1),
         wy1 * wx1 * inb(x1, y1)], axis=1).astype(jnp.float32)     # (B, 4, N)

    x0i = jnp.clip(x0.astype(jnp.int32), 0, W - 1)
    x1i = jnp.clip(x1.astype(jnp.int32), 0, W - 1)
    y0i = jnp.clip(y0.astype(jnp.int32), 0, H - 1)
    y1i = jnp.clip(y1.astype(jnp.int32), 0, H - 1)
    idx = jnp.stack(
        [y0i * W + x0i, y0i * W + x1i, y1i * W + x0i, y1i * W + x1i], axis=1)  # (B,4,N)
    return idx, weights


def point_sample(feat, points):
    """Pure-JAX reference of PointRend's point_sample (used by the uncertainty
    map in sampling_points and by the correctness check)."""
    B, C, H, W = feat.shape
    idx, wts = _bilinear_indices_and_weights(points, H, W)
    flat = feat.reshape(B, C, H * W)
    corners = jnp.take_along_axis(flat[:, None, :, :], idx[:, :, None, :], axis=3)  # (B,4,C,N)
    return jnp.sum(corners * wts[:, :, None, :].astype(feat.dtype), axis=1)         # (B,C,N)


def sampling_points_train(key, coarse, N, k=3, beta=0.75):
    """Training-time uncertainty-based point sampling (plain JAX glue)."""
    B = coarse.shape[0]
    key1, key2 = jax.random.split(key)
    sorted_mask = -jnp.sort(-coarse, axis=1)                       # descending over channels
    over = jax.random.uniform(key1, (B, k * N, 2), dtype=coarse.dtype)
    over_map = point_sample(sorted_mask, over)                     # (B, C, k*N)
    uncertainty = -(over_map[:, 0] - over_map[:, 1])               # (B, k*N)
    n_imp = int(beta * N)
    _, idx = jax.lax.top_k(uncertainty, n_imp)                     # (B, n_imp)
    importance = jnp.take_along_axis(over, idx[:, :, None], axis=1)    # (B, n_imp, 2)
    coverage = jax.random.uniform(key2, (B, N - n_imp, 2), dtype=coarse.dtype)
    return jnp.concatenate([importance, coverage], axis=1)         # (B, N, 2)


# ----------------------------------------------------------------------------
# Pallas kernel: bilinear combine (point_sample) + split 1x1 Conv1d MLP
# ----------------------------------------------------------------------------
def pointrend_mlp_kernel(cc_ref, cw_ref, fc_ref, fw_ref, wf_ref, wc_ref, out_ref):
    """cc_ref: (4, Cc, tn) bf16 coarse corners   cw_ref: (4, tn) f32 weights
       fc_ref: (4, Cf, tn) bf16 fine corners     fw_ref: (4, tn) f32 weights
       wf_ref: (nc, Cf) bf16                      wc_ref: (nc, Cc) f32
       out_ref: (nc, tn) f32 (pre-bias)."""

    def wsum(c_ref, w_ref):
        # 4-corner bilinear combine; f32 VPU accumulation (v5e-safe, precise).
        acc = c_ref[0].astype(jnp.float32) * w_ref[0:1, :]
        for i in range(1, 4):
            acc = acc + c_ref[i].astype(jnp.float32) * w_ref[i:i + 1, :]
        return acc

    fine = wsum(fc_ref, fw_ref)                                    # (Cf, tn) f32
    coarse = wsum(cc_ref, cw_ref)                                  # (Cc, tn) f32

    # Fine channels -> one MXU dot (bf16 operands, f32 accumulate).
    acc = jnp.dot(wf_ref[...], fine.astype(wf_ref.dtype),
                  preferred_element_type=jnp.float32)              # (nc, tn)

    # Coarse channels: Cc == num_classes is tiny (2..19), so a short VPU
    # outer-product loop beats a degenerate-K MXU dot and needs no VMEM
    # scratch round-trip.  (nc,1) x (1,tn) broadcast FMAs, all f32.
    Cc = cc_ref.shape[1]
    for c in range(Cc):
        acc = acc + wc_ref[:, c:c + 1] * coarse[c:c + 1, :]

    out_ref[...] = acc


def _tile_vmem_bytes(tn, Cc, Cf, nc, corner_itemsize):
    corners = 4 * (Cc + Cf) * tn * corner_itemsize      # coarse + fine corner tiles
    weights = 2 * 4 * tn * 4                            # f32 bilinear weights
    out = nc * tn * 4
    consts = nc * (Cf * corner_itemsize + Cc * 4)
    return 2 * (corners + weights + out) + consts       # double-buffered streams


def _choose_lane_tiling(BN, Cc, Cf, nc, corner_dtype, vmem_budget=40 << 20):
    """Biggest lane tile that fits the VMEM budget (<= ~40 MiB keeps v7x's
    64 MiB happy) and leaves >= 2 grid steps (both v7x TensorCores)."""
    isz = jnp.dtype(corner_dtype).itemsize
    tn = 128
    for t in (1024, 512, 256):
        if BN > t and _tile_vmem_bytes(t, Cc, Cf, nc, isz) <= vmem_budget:
            tn = t
            break
    bn_pad = max(2, pl.cdiv(BN, tn)) * tn
    return tn, bn_pad


def pointrend_point_head(coarse_feature, fine_feature, points, w, bias,
                         *, corner_dtype=jnp.bfloat16):
    """Fused point_sample(coarse) + point_sample(fine) + cat + Conv1d(1x1).
    w: (num_classes, Cc + Cf) with torch.cat([coarse, fine]) column order
    (coarse columns first).  Returns (B, num_classes, N) float32."""
    B, Cc, Hc, Wc = coarse_feature.shape
    Cf = fine_feature.shape[1]
    nc, Cin = w.shape
    assert Cin == Cc + Cf
    N = points.shape[1]
    BN = B * N

    tn, bn_pad = _choose_lane_tiling(BN, Cc, Cf, nc, corner_dtype)
    pad = bn_pad - BN

    def flat_pad_idx(idx, HW):
        # (B, 4, N) spatial -> (4, bn_pad) batch-offset flat indices
        # (lane axis is batch-major: j = b * N + n; padded lanes index 0).
        g = idx + (jnp.arange(B, dtype=jnp.int32) * HW)[:, None, None]
        g = jnp.transpose(g, (1, 0, 2)).reshape(4, BN)
        return jnp.pad(g, ((0, 0), (0, pad)))

    def flat_pad_w(wts):
        # (B, 4, N) -> (4, bn_pad) f32; padded lanes get zero weight.
        wts = jnp.transpose(wts, (1, 0, 2)).reshape(4, BN)
        return jnp.pad(wts, ((0, 0), (0, pad)))

    def gather_corners(feat, gidx):
        # Single gather from a (C, B*H*W) bf16 feature view -> corners already
        # in kernel layout (4, C, bn_pad); no post-gather cast/transpose/pad.
        Bf, C, H, W = feat.shape
        f = jnp.transpose(feat.reshape(Bf, C, H * W), (1, 0, 2)).reshape(C, Bf * H * W)
        f = f.astype(corner_dtype)
        return jnp.take_along_axis(f[None, :, :], gidx[:, None, :], axis=2)

    c_idx, c_w = _bilinear_indices_and_weights(points, Hc, Wc)
    f_idx, f_w = _bilinear_indices_and_weights(points, fine_feature.shape[2],
                                               fine_feature.shape[3])

    cc = gather_corners(coarse_feature, flat_pad_idx(c_idx, Hc * Wc))   # (4,Cc,bn_pad) bf16
    fc = gather_corners(fine_feature,
                        flat_pad_idx(f_idx, fine_feature.shape[2] * fine_feature.shape[3]))
    cw = flat_pad_w(c_w)                                                # (4,bn_pad) f32
    fw = flat_pad_w(f_w)

    # torch.cat([coarse, fine], dim=1) => Conv1d weight columns [coarse | fine].
    wc = w[:, :Cc].astype(jnp.float32)
    wf = w[:, Cc:].astype(corner_dtype)

    need = _tile_vmem_bytes(tn, Cc, Cf, nc, jnp.dtype(corner_dtype).itemsize)
    vmem_limit = int(min(max(2 * need, 16 << 20), 48 << 20))

    out = pl.pallas_call(
        pointrend_mlp_kernel,
        out_shape=jax.ShapeDtypeStruct((nc, bn_pad), jnp.float32),
        grid=(bn_pad // tn,),
        in_specs=[
            pl.BlockSpec((4, Cc, tn), lambda j: (0, 0, j)),
            pl.BlockSpec((4, tn), lambda j: (0, j)),
            pl.BlockSpec((4, Cf, tn), lambda j: (0, 0, j)),
            pl.BlockSpec((4, tn), lambda j: (0, j)),
            pl.BlockSpec((nc, Cf), lambda j: (0, 0)),
            pl.BlockSpec((nc, Cc), lambda j: (0, 0)),
        ],
        out_specs=pl.BlockSpec((nc, tn), lambda j: (0, j)),
        compiler_params=pltpu.CompilerParams(
            dimension_semantics=("parallel",),
            vmem_limit_bytes=vmem_limit),
    )(cc, cw, fc, fw, wf, wc)

    # Bias on the tiny (nc, BN) slab (padded lanes never see it), then unfold batch.
    out = out[:, :BN] + bias.astype(jnp.float32)[:, None]
    out = out.reshape(nc, B, N)
    return jnp.transpose(out, (1, 0, 2))                               # (B, nc, N)


# ----------------------------------------------------------------------------
# Forward pass of PointRendUpsample (training branch)
# ----------------------------------------------------------------------------
def pointrend_upsample_forward(key, origin_shape, fine_grained_feature,
                               coarse_feature, w, bias, k=3, beta=0.75):
    N = origin_shape // 16
    points = sampling_points_train(key, coarse_feature, N, k, beta)     # (B, N, 2)
    rend = pointrend_point_head(coarse_feature, fine_grained_feature, points, w, bias)
    return {'rend': rend, 'points': points}

# TODO(synk): the inference() subdivision loop (F.interpolate + scatter_
# refinement, data-dependent trip count over HBM-sized maps) is not implemented.
# TODO(synk): for very large C*N (real PointRend inference, N=8096) the 4-corner
# gather could move fully into the kernel (feature in pl.ANY, scalar-prefetched
# indices + manual DMA) instead of the XLA-side gather used here.


if __name__ == "__main__":
    key = jax.random.PRNGKey(0)
    kcoarse, kfine, kw, kb, kpts = jax.random.split(key, 5)

    # Small shapes consistent with the module (real model: in_c=514=512+2).
    B = 2
    num_classes = 2
    Cf = 32                      # fine-grained (res2) channels
    in_c = Cf + num_classes      # 34
    Hc = Wc = 8                  # coarse prediction spatial size
    Hf = Wf = 16                 # fine-grained feature spatial size
    origin_shape = 512           # -> N = origin_shape // 16 = 32 sampled points
    k_over, beta = 3, 0.75
    N = origin_shape // 16

    coarse_feature = jax.random.normal(kcoarse, (B, num_classes, Hc, Wc), jnp.float32)
    fine_feature = jax.random.normal(kfine, (B, Cf, Hf, Wf), jnp.float32)

    # Deterministic Conv1d(in_c, num_classes, 1) parameters;
    # columns ordered [coarse | fine] = torch.cat([coarse, fine], dim=1).
    w = jax.random.normal(kw, (num_classes, in_c), jnp.float32) * 0.05
    bias = jax.random.normal(kb, (num_classes,), jnp.float32) * 0.05

    out = pointrend_upsample_forward(kpts, origin_shape, fine_feature,
                                     coarse_feature, w, bias, k_over, beta)
    rend = jax.block_until_ready(out['rend'])
    points = jax.block_until_ready(out['points'])

    # --- Reference A: exact f32 semantics of the torch module's hot path ----
    coarse_s = point_sample(coarse_feature, points)
    fine_s = point_sample(fine_feature, points)
    feat = jnp.concatenate([coarse_s, fine_s], axis=1)             # (B, in_c, N)
    ref_f32 = jnp.einsum('oc,bcn->bon', w, feat,
                         precision=jax.lax.Precision.HIGHEST) + bias[None, :, None]

    # --- Reference B: mirrors the kernel's numerics (bf16 corners / bf16 MXU
    # --- fine path, f32 weights and accumulation) ---------------------------
    def bf(x):
        return x.astype(jnp.bfloat16).astype(jnp.float32)

    def corners_of(feat_in):
        Bf, C, H, W = feat_in.shape
        idx, wts = _bilinear_indices_and_weights(points, H, W)
        flat = feat_in.reshape(Bf, C, H * W)
        corners = jnp.take_along_axis(flat[:, None, :, :], idx[:, :, None, :], axis=3)
        return corners, wts

    cc_r, cw_r = corners_of(coarse_feature)
    fc_r, fw_r = corners_of(fine_feature)
    coarse_b = jnp.sum(bf(cc_r) * cw_r[:, :, None, :], axis=1)     # (B, Cc, N) f32
    fine_b = jnp.sum(bf(fc_r) * fw_r[:, :, None, :], axis=1)       # (B, Cf, N) f32
    w_coarse = w[:, :num_classes]
    w_fine = w[:, num_classes:]
    ref_bf = (jnp.einsum('oc,bcn->bon', bf(w_fine), bf(fine_b),
                         precision=jax.lax.Precision.HIGHEST)
              + jnp.einsum('oc,bcn->bon', w_coarse, coarse_b,
                           precision=jax.lax.Precision.HIGHEST)
              + bias[None, :, None])

    assert rend.shape == (B, num_classes, N)
    assert points.shape == (B, N, 2)
    err_bf = float(jnp.max(jnp.abs(rend - ref_bf)))
    err_f32 = float(jnp.max(jnp.abs(rend - ref_f32)))
    assert jnp.allclose(rend, ref_bf, atol=5e-3, rtol=5e-3), err_bf
    assert jnp.allclose(rend, ref_f32, atol=5e-2, rtol=5e-2), err_f32

    print("KERNEL_OK")
</pallas_src>

<mosaic_0001>
module attributes {stable_mosaic.version = 11 : i64} {
  func.func @pointrend_mlp_kernel(%arg0: i32, %arg1: memref<4x2x128xbf16, #tpu.memory_space<vmem>>, %arg2: memref<4x128xf32, #tpu.memory_space<vmem>>, %arg3: memref<4x32x128xbf16, #tpu.memory_space<vmem>>, %arg4: memref<4x128xf32, #tpu.memory_space<vmem>>, %arg5: memref<2x32xbf16, #tpu.memory_space<vmem>>, %arg6: memref<2x2xf32, #tpu.memory_space<vmem>>, %arg7: memref<2x128xf32, #tpu.memory_space<vmem>>) attributes {dimension_semantics = [#tpu.dimension_semantics<parallel>], iteration_bounds = array<i64: 2>, scalar_prefetch = 0 : i64, scratch_operands = 0 : i64, tpu.core_type = #tpu.core_type<tc>, window_params = [{transform_indices = @transform_0, window_bounds = array<i64: 4, 2, 128>}, {transform_indices = @transform_1, window_bounds = array<i64: 4, 128>}, {transform_indices = @transform_2, window_bounds = array<i64: 4, 32, 128>}, {transform_indices = @transform_3, window_bounds = array<i64: 4, 128>}, {pipeline_mode = #tpu.pipeline_mode<synchronous>, transform_indices = @transform_4, window_bounds = array<i64: 2, 32>}, {pipeline_mode = #tpu.pipeline_mode<synchronous>, transform_indices = @transform_5, window_bounds = array<i64: 2, 2>}, {transform_indices = @transform_6, window_bounds = array<i64: 2, 128>}]} {
    %c0 = arith.constant 0 : index
    %c0_0 = arith.constant 0 : index
    %c0_1 = arith.constant 0 : index
    %0 = vector.load %arg3[%c0, %c0_0, %c0_1] : memref<4x32x128xbf16, #tpu.memory_space<vmem>>, vector<1x32x128xbf16>
    %1 = vector.shape_cast %0 : vector<1x32x128xbf16> to vector<32x128xbf16>
    %2 = arith.extf %1 : vector<32x128xbf16> to vector<32x128xf32>
    %c0_2 = arith.constant 0 : index
    %c0_3 = arith.constant 0 : index
    %3 = vector.load %arg4[%c0_2, %c0_3] : memref<4x128xf32, #tpu.memory_space<vmem>>, vector<1x128xf32>
    %4 = vector.broadcast %3 : vector<1x128xf32> to vector<32x128xf32>
    %5 = arith.mulf %2, %4 : vector<32x128xf32>
    %c1 = arith.constant 1 : index
    %c0_4 = arith.constant 0 : index
    %c0_5 = arith.constant 0 : index
    %6 = vector.load %arg3[%c1, %c0_4, %c0_5] : memref<4x32x128xbf16, #tpu.memory_space<vmem>>, vector<1x32x128xbf16>
    %7 = vector.shape_cast %6 : vector<1x32x128xbf16> to vector<32x128xbf16>
    %8 = arith.extf %7 : vector<32x128xbf16> to vector<32x128xf32>
    %c1_6 = arith.constant 1 : index
    %c0_7 = arith.constant 0 : index
    %9 = vector.load %arg4[%c1_6, %c0_7] : memref<4x128xf32, #tpu.memory_space<vmem>>, vector<1x128xf32>
    %10 = vector.broadcast %9 : vector<1x128xf32> to vector<32x128xf32>
    %11 = arith.mulf %8, %10 : vector<32x128xf32>
    %12 = arith.addf %5, %11 : vector<32x128xf32>
    %c2 = arith.constant 2 : index
    %c0_8 = arith.constant 0 : index
    %c0_9 = arith.constant 0 : index
    %13 = vector.load %arg3[%c2, %c0_8, %c0_9] : memref<4x32x128xbf16, #tpu.memory_space<vmem>>, vector<1x32x128xbf16>
    %14 = vector.shape_cast %13 : vector<1x32x128xbf16> to vector<32x128xbf16>
    %15 = arith.extf %14 : vector<32x128xbf16> to vector<32x128xf32>
    %c2_10 = arith.constant 2 : index
    %c0_11 = arith.constant 0 : index
    %16 = vector.load %arg4[%c2_10, %c0_11] : memref<4x128xf32, #tpu.memory_space<vmem>>, vector<1x128xf32>
    %17 = vector.broadcast %16 : vector<1x128xf32> to vector<32x128xf32>
    %18 = arith.mulf %15, %17 : vector<32x128xf32>
    %19 = arith.addf %12, %18 : vector<32x128xf32>
    %c3 = arith.constant 3 : index
    %c0_12 = arith.constant 0 : index
    %c0_13 = arith.constant 0 : index
    %20 = vector.load %arg3[%c3, %c0_12, %c0_13] : memref<4x32x128xbf16, #tpu.memory_space<vmem>>, vector<1x32x128xbf16>
    %21 = vector.shape_cast %20 : vector<1x32x128xbf16> to vector<32x128xbf16>
    %22 = arith.extf %21 : vector<32x128xbf16> to vector<32x128xf32>
    %c3_14 = arith.constant 3 : index
    %c0_15 = arith.constant 0 : index
    %23 = vector.load %arg4[%c3_14, %c0_15] : memref<4x128xf32, #tpu.memory_space<vmem>>, vector<1x128xf32>
    %24 = vector.broadcast %23 : vector<1x128xf32> to vector<32x128xf32>
    %25 = arith.mulf %22, %24 : vector<32x128xf32>
    %26 = arith.addf %19, %25 : vector<32x128xf32>
    %c0_16 = arith.constant 0 : index
    %c0_17 = arith.constant 0 : index
    %c0_18 = arith.constant 0 : index
    %27 = vector.load %arg1[%c0_16, %c0_17, %c0_18] : memref<4x2x128xbf16, #tpu.memory_space<vmem>>, vector<1x2x128xbf16>
    %28 = vector.shape_cast %27 : vector<1x2x128xbf16> to vector<2x128xbf16>
    %29 = arith.extf %28 : vector<2x128xbf16> to vector<2x128xf32>
    %c0_19 = arith.constant 0 : index
    %c0_20 = arith.constant 0 : index
    %30 = vector.load %arg2[%c0_19, %c0_20] : memref<4x128xf32, #tpu.memory_space<vmem>>, vector<1x128xf32>
    %31 = vector.broadcast %30 : vector<1x128xf32> to vector<2x128xf32>
    %32 = arith.mulf %29, %31 : vector<2x128xf32>
    %c1_21 = arith.constant 1 : index
    %c0_22 = arith.constant 0 : index
    %c0_23 = arith.constant 0 : index
    %33 = vector.load %arg1[%c1_21, %c0_22, %c0_23] : memref<4x2x128xbf16, #tpu.memory_space<vmem>>, vector<1x2x128xbf16>
    %34 = vector.shape_cast %33 : vector<1x2x128xbf16> to vector<2x128xbf16>
    %35 = arith.extf %34 : vector<2x128xbf16> to vector<2x128xf32>
    %c1_24 = arith.constant 1 : index
    %c0_25 = arith.constant 0 : index
    %36 = vector.load %arg2[%c1_24, %c0_25] : memref<4x128xf32, #tpu.memory_space<vmem>>, vector<1x128xf32>
    %37 = vector.broadcast %36 : vector<1x128xf32> to vector<2x128xf32>
    %38 = arith.mulf %35, %37 : vector<2x128xf32>
    %39 = arith.addf %32, %38 : vector<2x128xf32>
    %c2_26 = arith.constant 2 : index
    %c0_27 = arith.constant 0 : index
    %c0_28 = arith.constant 0 : index
    %40 = vector.load %arg1[%c2_26, %c0_27, %c0_28] : memref<4x2x128xbf16, #tpu.memory_space<vmem>>, vector<1x2x128xbf16>
    %41 = vector.shape_cast %40 : vector<1x2x128xbf16> to vector<2x128xbf16>
    %42 = arith.extf %41 : vector<2x128xbf16> to vector<2x128xf32>
    %c2_29 = arith.constant 2 : index
    %c0_30 = arith.constant 0 : index
    %43 = vector.load %arg2[%c2_29, %c0_30] : memref<4x128xf32, #tpu.memory_space<vmem>>, vector<1x128xf32>
    %44 = vector.broadcast %43 : vector<1x128xf32> to vector<2x128xf32>
    %45 = arith.mulf %42, %44 : vector<2x128xf32>
    %46 = arith.addf %39, %45 : vector<2x128xf32>
    %c3_31 = arith.constant 3 : index
    %c0_32 = arith.constant 0 : index
    %c0_33 = arith.constant 0 : index
    %47 = vector.load %arg1[%c3_31, %c0_32, %c0_33] : memref<4x2x128xbf16, #tpu.memory_space<vmem>>, vector<1x2x128xbf16>
    %48 = vector.shape_cast %47 : vector<1x2x128xbf16> to vector<2x128xbf16>
    %49 = arith.extf %48 : vector<2x128xbf16> to vector<2x128xf32>
    %c3_34 = arith.constant 3 : index
    %c0_35 = arith.constant 0 : index
    %50 = vector.load %arg2[%c3_34, %c0_35] : memref<4x128xf32, #tpu.memory_space<vmem>>, vector<1x128xf32>
    %51 = vector.broadcast %50 : vector<1x128xf32> to vector<2x128xf32>
    %52 = arith.mulf %49, %51 : vector<2x128xf32>
    %53 = arith.addf %46, %52 : vector<2x128xf32>
    %c0_36 = arith.constant 0 : index
    %c0_37 = arith.constant 0 : index
    %54 = vector.load %arg5[%c0_36, %c0_37] : memref<2x32xbf16, #tpu.memory_space<vmem>>, vector<2x32xbf16>
    %55 = arith.truncf %26 : vector<32x128xf32> to vector<32x128xbf16>
    %cst = arith.constant dense<0.000000e+00> : vector<2x128xf32>
    %56 = tpu.matmul %54, %55, %cst {dimension_numbers = #tpu.dot_dimension_numbers<[1], [0], [0], [1], [0, 0, 1, 1], [], []>} : vector<2x32xbf16>, vector<32x128xbf16>, vector<2x128xf32> -> vector<2x128xf32>
    %c0_38 = arith.constant 0 : index
    %c0_39 = arith.constant 0 : index
    %57 = vector.load %arg6[%c0_38, %c0_39] : memref<2x2xf32, #tpu.memory_space<vmem>>, vector<2x1xf32>
    %58 = vector.extract_strided_slice %53 {offsets = [0, 0], sizes = [1, 128], strides = [1, 1]} : vector<2x128xf32> to vector<1x128xf32>
    %59 = vector.broadcast %57 : vector<2x1xf32> to vector<2x128xf32>
    %60 = vector.broadcast %58 : vector<1x128xf32> to vector<2x128xf32>
    %61 = arith.mulf %59, %60 : vector<2x128xf32>
    %62 = arith.addf %56, %61 : vector<2x128xf32>
    %c0_40 = arith.constant 0 : index
    %c1_41 = arith.constant 1 : index
    %63 = vector.load %arg6[%c0_40, %c1_41] : memref<2x2xf32, #tpu.memory_space<vmem>>, vector<2x1xf32>
    %64 = vector.extract_strided_slice %53 {offsets = [1, 0], sizes = [1, 128], strides = [1, 1]} : vector<2x128xf32> to vector<1x128xf32>
    %65 = vector.broadcast %63 : vector<2x1xf32> to vector<2x128xf32>
    %66 = vector.broadcast %64 : vector<1x128xf32> to vector<2x128xf32>
    %67 = arith.mulf %65, %66 : vector<2x128xf32>
    %68 = arith.addf %62, %67 : vector<2x128xf32>
    %c0_42 = arith.constant 0 : index
    %c0_43 = arith.constant 0 : index
    %69 = vector.load %arg7[%c0_42, %c0_43] : memref<2x128xf32, #tpu.memory_space<vmem>>, vector<2x128xf32>
    tpu.vector_store %arg7[%c0_42, %c0_43], %68 {strides = array<i32>} : memref<2x128xf32, #tpu.memory_space<vmem>>, vector<2x128xf32>,
    return
  }
  func.func @transform_0(%arg0: i32) -> (i32, i32, i32) {
    %c0_i32 = arith.constant 0 : i32
    %c0_i32_0 = arith.constant 0 : i32
    %c0_i32_1 = arith.constant 0 : i32
    return %c0_i32, %c0_i32_0, %arg0 : i32, i32, i32
  }
  func.func @transform_1(%arg0: i32) -> (i32, i32) {
    %c0_i32 = arith.constant 0 : i32
    %c0_i32_0 = arith.constant 0 : i32
    return %c0_i32, %arg0 : i32, i32
  }
  func.func @transform_2(%arg0: i32) -> (i32, i32, i32) {
    %c0_i32 = arith.constant 0 : i32
    %c0_i32_0 = arith.constant 0 : i32
    %c0_i32_1 = arith.constant 0 : i32
    return %c0_i32, %c0_i32_0, %arg0 : i32, i32, i32
  }
  func.func @transform_3(%arg0: i32) -> (i32, i32) {
    %c0_i32 = arith.constant 0 : i32
    %c0_i32_0 = arith.constant 0 : i32
    return %c0_i32, %arg0 : i32, i32
  }
  func.func @transform_4(%arg0: i32) -> (i32, i32) {
    %c0_i32 = arith.constant 0 : i32
    %c0_i32_0 = arith.constant 0 : i32
    %c0_i32_1 = arith.constant 0 : i32
    return %c0_i32, %c0_i32_0 : i32, i32
  }
  func.func @transform_5(%arg0: i32) -> (i32, i32) {
    %c0_i32 = arith.constant 0 : i32
    %c0_i32_0 = arith.constant 0 : i32
    %c0_i32_1 = arith.constant 0 : i32
    return %c0_i32, %c0_i32_0 : i32, i32
  }
  func.func @transform_6(%arg0: i32) -> (i32, i32) {
    %c0_i32 = arith.constant 0 : i32
    %c0_i32_0 = arith.constant 0 : i32
    return %c0_i32, %arg0 : i32, i32
  }
}

</mosaic_0001>

<llo_original>
// kernel: tpu_custom_call.1
$region0: #{tpu_custom_call.1}
  #allocation0 [shape = 'u32[]', space=smem, size = 0x4, offset = 0x4, fixed_abs, tag = 'smem constant byte address 0x4 - core index']
  #allocation1 [shape = 'u32[144,128]{1,0:T(1,128)}', space=vmem, size = 0x12000, scoped, tag = 'internal scratch']
  %s0 = inlined_call_operand.hbm [shape: bf16[4,2,256], index: 0, kind: input, shape index: {}]
  %s1 = inlined_call_operand.hbm [shape: f32[4,256], index: 1, kind: input, shape index: {}]
  %s2 = inlined_call_operand.hbm [shape: bf16[4,32,256], index: 2, kind: input, shape index: {}]
  %s3 = inlined_call_operand.hbm [shape: f32[4,256], index: 3, kind: input, shape index: {}]
  %s4 = inlined_call_operand.vmem [shape: bf16[2,32], index: 4, kind: input, shape index: {}]
  %s5 = inlined_call_operand.vmem [shape: f32[2,2], index: 5, kind: input, shape index: {}]
  %s6 = inlined_call_operand.hbm [shape: f32[2,256], index: 6, kind: output, shape index: {}]
  %s7 = sld [smem:[#allocation0]]
  $region73: #{tpu_custom_call.1} parent=0
    _
  %s9 = ssub.s32 1, %s7
  %s10 = scalar_select 0, %s9, %s7
  $region1: #{tpu_custom_call.1} parent=0
    #allocation2 [shape = 'u8[4096]{0}', space=vmem, size = 0x1000, scoped, tag = 'input window, operand 0']
    #allocation3 [shape = 's32[2]{0}', space=sflag, size = 0x8, scoped, tag = 'scoped memory for tpu_custom_call.1']
    #allocation4 [shape = 's32[2]{0}', space=sflag, size = 0x8, scoped, tag = 'scoped memory for tpu_custom_call.1']
    #allocation5 [shape = 'u8[4096]{0}', space=vmem, size = 0x1000, scoped, tag = 'input window, operand 1']
    #allocation6 [shape = 's32[2]{0}', space=sflag, size = 0x8, scoped, tag = 'scoped memory for tpu_custom_call.1']
    #allocation7 [shape = 'u8[65536]{0}', space=vmem, size = 0x10000, scoped, tag = 'input window, operand 2']
    #allocation8 [shape = 'u8[4096]{0}', space=vmem, size = 0x1000, scoped, tag = 'input window, operand 3']
    #allocation9 [shape = 's32[2]{0}', space=sflag, size = 0x8, scoped, tag = 'scoped memory for tpu_custom_call.1']
    #allocation10 [shape = 'u8[2048]{0}', space=vmem, size = 0x800, scoped, tag = 'output window, operand 0']
    %11 = vsyncpa [#allocation3], 0
    %s12 = scalar_lea.sflag [#allocation3], 1
    %13 = vsyncpa %s12, 0
    %14 = vsyncpa [#allocation6], 0
    %s15 = scalar_lea.sflag [#allocation6], 1
    %16 = vsyncpa %s15, 0
    %17 = vsyncpa [#allocation9], 0
    %s18 = scalar_lea.sflag [#allocation9], 1
    %19 = vsyncpa %s18, 0
    %20 = vsyncpa [#allocation4], 0
    %s21 = scalar_lea.sflag [#allocation4], 1
    %22 = vsyncpa %s21, 0
    loop: start=0, step=1, limit=4
    $region2: #{tpu_custom_call.1} parent=1 // loop_pre_header
      _
    $region3: #{tpu_custom_call.1} parent=1 // loop_header
      %s24 = sphi 0, %s28
      %p25 = scmp.ge.s32.totalorder %s24, 4
      %s34 = sphi 0, %s36
      %s37 = sphi 0, %s34
      %s38 = sphi 0, %s37
      %s54 = sphi 0, %s38
      %s60 = sphi 0, %s62
      %s63 = sphi 0, %s60
      %s64 = sphi 0, %s63
      %s80 = sphi 0, %s64
      %s86 = sphi 0, %s88
      %s89 = sphi 0, %s86
      %s90 = sphi 0, %s89
      %s106 = sphi 0, %s90
      %s112 = sphi 0, %s114
      %s115 = sphi 0, %s112
      %s116 = sphi 0, %s115
      %s132 = sphi 0, %s116
      %s136 = sphi 0, %s136
      %s138 = sphi 0, %s136
      %s139 = sphi 0, %s138
      %s153 = sphi 0, %s139
      %s157 = sphi 0, %s157
      %s159 = sphi 0, %s157
      %s160 = sphi 0, %s159
      %s174 = sphi 0, %s160
      %s180 = sphi 0, %s182
      %s183 = sphi 0, %s180
      %s184 = sphi 0, %s183
      %s200 = sphi 0, %s184
    $region4: #{tpu_custom_call.1} parent=1 // loop_header_branch
      %27 = sbr.rel (%p25) target = $region8
    $region5: #{tpu_custom_call.1} parent=1 // loop_body
      %s29 = ssub.s32 %s24, 1
      %s30 = ssub.s32 %s24, 2
      %s31 = sadd.s32 %s24, 1
      %s32 = ssub.s32 %s24, %s31
      %p33 = scmp.eq.s32.totalorder %s32, 0
      %s35 = sadd.s32 %s34, 1
      %s36 = scalar_select %p33, %s34, %s35
      %p39 = pneg %p33
      %p40 = scmp.eq.s32.totalorder %s24, 1
      %p41 = por %p39, %p40
      %p42 = scmp.ne.s32.totalorder %s34, %s37
      %p43 = scmp.eq.s32.totalorder %s24, 0
      %p44 = por %p42, %p43
      %p45 = scmp.ne.s32.totalorder %s34, %s37
      %p46 = scmp.eq.s32.totalorder %s29, 1
      %p47 = por %p45, %p46
      %p48 = scmp.ne.s32.totalorder %s37, %s38
      %p49 = scmp.eq.s32.totalorder %s29, 0
      %p50 = por %p48, %p49
      %p51 = scmp.ne.s32.totalorder %s37, %s38
      %p52 = scmp.eq.s32.totalorder %s30, 1
      %p53 = por %p51, %p52
      %p55 = scmp.ne.s32.totalorder %s38, %s54
      %p56 = scmp.eq.s32.totalorder %s30, 0
      %p57 = por %p55, %p56
      %s58 = ssub.s32 %s24, %s31
      %p59 = scmp.eq.s32.totalorder %s58, 0
      %s61 = sadd.s32 %s60, 1
      %s62 = scalar_select %p59, %s60, %s61
      %p65 = pneg %p59
      %p66 = scmp.eq.s32.totalorder %s24, 1
      %p67 = por %p65, %p66
      %p68 = scmp.ne.s32.totalorder %s60, %s63
      %p69 = scmp.eq.s32.totalorder %s24, 0
      %p70 = por %p68, %p69
      %p71 = scmp.ne.s32.totalorder %s60, %s63
      %p72 = scmp.eq.s32.totalorder %s29, 1
      %p73 = por %p71, %p72
      %p74 = scmp.ne.s32.totalorder %s63, %s64
      %p75 = scmp.eq.s32.totalorder %s29, 0
      %p76 = por %p74, %p75
      %p77 = scmp.ne.s32.totalorder %s63, %s64
      %p78 = scmp.eq.s32.totalorder %s30, 1
      %p79 = por %p77, %p78
      %p81 = scmp.ne.s32.totalorder %s64, %s80
      %p82 = scmp.eq.s32.totalorder %s30, 0
      %p83 = por %p81, %p82
      %s84 = ssub.s32 %s24, %s31
      %p85 = scmp.eq.s32.totalorder %s84, 0
      %s87 = sadd.s32 %s86, 1
      %s88 = scalar_select %p85, %s86, %s87
      %p91 = pneg %p85
      %p92 = scmp.eq.s32.totalorder %s24, 1
      %p93 = por %p91, %p92
      %p94 = scmp.ne.s32.totalorder %s86, %s89
      %p95 = scmp.eq.s32.totalorder %s24, 0
      %p96 = por %p94, %p95
      %p97 = scmp.ne.s32.totalorder %s86, %s89
      %p98 = scmp.eq.s32.totalorder %s29, 1
      %p99 = por %p97, %p98
      %p100 = scmp.ne.s32.totalorder %s89, %s90
      %p101 = scmp.eq.s32.totalorder %s29, 0
      %p102 = por %p100, %p101
      %p103 = scmp.ne.s32.totalorder %s89, %s90
      %p104 = scmp.eq.s32.totalorder %s30, 1
      %p105 = por %p103, %p104
      %p107 = scmp.ne.s32.totalorder %s90, %s106
      %p108 = scmp.eq.s32.totalorder %s30, 0
      %p109 = por %p107, %p108
      %s110 = ssub.s32 %s24, %s31
      %p111 = scmp.eq.s32.totalorder %s110, 0
      %s113 = sadd.s32 %s112, 1
      %s114 = scalar_select %p111, %s112, %s113
      %p117 = pneg %p111
      %p118 = scmp.eq.s32.totalorder %s24, 1
      %p119 = por %p117, %p118
      %p120 = scmp.ne.s32.totalorder %s112, %s115
      %p121 = scmp.eq.s32.totalorder %s24, 0
      %p122 = por %p120, %p121
      %p123 = scmp.ne.s32.totalorder %s112, %s115
      %p124 = scmp.eq.s32.totalorder %s29, 1
      %p125 = por %p123, %p124
      %p126 = scmp.ne.s32.totalorder %s115, %s116
      %p127 = scmp.eq.s32.totalorder %s29, 0
      %p128 = por %p126, %p127
      %p129 = scmp.ne.s32.totalorder %s115, %s116
      %p130 = scmp.eq.s32.totalorder %s30, 1
      %p131 = por %p129, %p130
      %p133 = scmp.ne.s32.totalorder %s116, %s132
      %p134 = scmp.eq.s32.totalorder %s30, 0
      %p135 = por %p133, %p134
      %s137 = sadd.s32 %s136, 1
      %p140 = scmp.eq.s32.totalorder %s24, 1
      %p141 = scmp.ne.s32.totalorder %s136, %s138
      %p142 = scmp.eq.s32.totalorder %s24, 0
      %p143 = por %p141, %p142
      %p144 = scmp.ne.s32.totalorder %s136, %s138
      %p145 = scmp.eq.s32.totalorder %s29, 1
      %p146 = por %p144, %p145
      %p147 = scmp.ne.s32.totalorder %s138, %s139
      %p148 = scmp.eq.s32.totalorder %s29, 0
      %p149 = por %p147, %p148
      %p150 = scmp.ne.s32.totalorder %s138, %s139
      %p151 = scmp.eq.s32.totalorder %s30, 1
      %p152 = por %p150, %p151
      %p154 = scmp.ne.s32.totalorder %s139, %s153
      %p155 = scmp.eq.s32.totalorder %s30, 0
      %p156 = por %p154, %p155
      %s158 = sadd.s32 %s157, 1
      %p161 = scmp.eq.s32.totalorder %s24, 1
      %p162 = scmp.ne.s32.totalorder %s157, %s159
      %p163 = scmp.eq.s32.totalorder %s24, 0
      %p164 = por %p162, %p163
      %p165 = scmp.ne.s32.totalorder %s157, %s159
      %p166 = scmp.eq.s32.totalorder %s29, 1
      %p167 = por %p165, %p166
      %p168 = scmp.ne.s32.totalorder %s159, %s160
      %p169 = scmp.eq.s32.totalorder %s29, 0
      %p170 = por %p168, %p169
      %p171 = scmp.ne.s32.totalorder %s159, %s160
      %p172 = scmp.eq.s32.totalorder %s30, 1
      %p173 = por %p171, %p172
      %p175 = scmp.ne.s32.totalorder %s160, %s174
      %p176 = scmp.eq.s32.totalorder %s30, 0
      %p177 = por %p175, %p176
      %s178 = ssub.s32 %s24, %s31
      %p179 = scmp.eq.s32.totalorder %s178, 0
      %s181 = sadd.s32 %s180, 1
      %s182 = scalar_select %p179, %s180, %s181
      %p185 = pneg %p179
      %p186 = scmp.eq.s32.totalorder %s24, 1
      %p187 = por %p185, %p186
      %p188 = scmp.ne.s32.totalorder %s180, %s183
      %p189 = scmp.eq.s32.totalorder %s24, 0
      %p190 = por %p188, %p189
      %p191 = scmp.ne.s32.totalorder %s180, %s183
      %p192 = scmp.eq.s32.totalorder %s29, 1
      %p193 = por %p191, %p192
      %p194 = scmp.ne.s32.totalorder %s183, %s184
      %p195 = scmp.eq.s32.totalorder %s29, 0
      %p196 = por %p194, %p195
      %p197 = scmp.ne.s32.totalorder %s183, %s184
      %p198 = scmp.eq.s32.totalorder %s30, 1
      %p199 = por %p197, %p198
      %p201 = scmp.ne.s32.totalorder %s184, %s200
      %p202 = scmp.eq.s32.totalorder %s30, 0
      %p203 = por %p201, %p202
      %p204 = scmp.le.s32.totalorder 1, %s24
      %p205 = scmp.lt.s32.totalorder %s24, 3
      %p206 = pnand %p204, %p205
      %p207 = pneg %p206
      // Predicated region
      $region9: #{tpu_custom_call.1} parent=5 // pred_check
        _
      $region10: #{tpu_custom_call.1} parent=5 // pred_check_branch
        %209 = sbr.rel (%p206) target = $region12
      $region11: #{tpu_custom_call.1} parent=5 // pred_region
        %s210 = ssub.s32 %s24, 1
        // Predicated region
        $region13: #{tpu_custom_call.1} parent=11 // pred_check
          %p211 = pneg %p149
        $region14: #{tpu_custom_call.1} parent=11 // pred_check_branch
          %213 = sbr.rel (%p211) target = $region16
        $region15: #{tpu_custom_call.1} parent=11 // pred_region
          _
        $region16: #{tpu_custom_call.1} parent=11 // pred_fallthru
          _
        // Predicated region
        $region17: #{tpu_custom_call.1} parent=11 // pred_check
          %p214 = pneg %p170
        $region18: #{tpu_custom_call.1} parent=11 // pred_check_branch
          %216 = sbr.rel (%p214) target = $region20
        $region19: #{tpu_custom_call.1} parent=11 // pred_region
          _
        $region20: #{tpu_custom_call.1} parent=11 // pred_fallthru
          _
      $region12: #{tpu_custom_call.1} parent=5 // pred_fallthru
        _
      %p217 = scmp.lt.s32.totalorder %s24, 2
      // Predicated region
      $region21: #{tpu_custom_call.1} parent=5 // pred_check
        %p218 = pneg %p217
      $region22: #{tpu_custom_call.1} parent=5 // pred_check_branch
        %220 = sbr.rel (%p218) target = $region24
      $region23: #{tpu_custom_call.1} parent=5 // pred_region
        // Predicated region
        $region25: #{tpu_custom_call.1} parent=23 // pred_check
          %p221 = pneg %p44
        $region26: #{tpu_custom_call.1} parent=23 // pred_check_branch
          %223 = sbr.rel (%p221) target = $region28
        $region27: #{tpu_custom_call.1} parent=23 // pred_region
          %s224 = sand.u32 %s34, 1
          %s225 = scalar_lea.sflag [#allocation3], %s224
          %s226 = sand.u32 %s34, 1
          %s227 = smul.addr %s226, 4
          %s228 = scalar_lea.vmem [#allocation2], %s227
          %s230 = ssub.s32 64, 64
          %231 = vsyncadd %s225, %s230
          %s232 = smul.addr %s24, 16
          %s233 = scalar_lea.hbm %s0, %s232
          %s234 = sshll.u32 %s228, 4
          %s235 = int_to_ptr.vmem [resolvable:$true] %s234
          %240 = dma.hbm_to_vmem [thread:$0]  %s233, 64, %s235, %s225, 32, 16, 1
        $region28: #{tpu_custom_call.1} parent=23 // pred_fallthru
          _
        // Predicated region
        $region29: #{tpu_custom_call.1} parent=23 // pred_check
          %p241 = pneg %p70
        $region30: #{tpu_custom_call.1} parent=23 // pred_check_branch
          %243 = sbr.rel (%p241) target = $region32
        $region31: #{tpu_custom_call.1} parent=23 // pred_region
          %s244 = sand.u32 %s24, 1
          %s245 = scalar_lea.sflag [#allocation6], %s244
          %s246 = sand.u32 %s60, 1
          %s247 = smul.addr %s246, 4
          %s248 = scalar_lea.vmem [#allocation5], %s247
          %s250 = ssub.s32 64, 64
          %251 = vsyncadd %s245, %s250
          %s252 = smul.addr %s24, 64
          %s253 = scalar_lea.hbm %s1, %s252
          %s255 = sshll.u32 %s248, 4
          %s256 = int_to_ptr.vmem [resolvable:$true] %s255
          %258 = dma.hbm_to_vmem [thread:$0]  %s253, 64, %s256, %s245
        $region32: #{tpu_custom_call.1} parent=23 // pred_fallthru
          _
        // Predicated region
        $region33: #{tpu_custom_call.1} parent=23 // pred_check
          %p259 = pneg %p96
        $region34: #{tpu_custom_call.1} parent=23 // pred_check_branch
          %261 = sbr.rel (%p259) target = $region36
        $region35: #{tpu_custom_call.1} parent=23 // pred_region
          %s262 = sand.u32 %s24, 1
          %s263 = scalar_lea.sflag [#allocation6], %s262
          %s264 = sand.u32 %s86, 1
          %s265 = smul.addr %s264, 64
          %s266 = scalar_lea.vmem [#allocation7], %s265
          %s268 = ssub.s32 1024, 1024
          %269 = vsyncadd %s263, %s268
          %s270 = smul.addr %s24, 64
          %s271 = scalar_lea.hbm %s2, %s270
          %s272 = sshll.u32 %s266, 4
          %s273 = int_to_ptr.vmem [resolvable:$true] %s272
          %278 = dma.hbm_to_vmem [thread:$0]  %s271, 1024, %s273, %s263, 128, 64, 4
        $region36: #{tpu_custom_call.1} parent=23 // pred_fallthru
          _
        // Predicated region
        $region37: #{tpu_custom_call.1} parent=23 // pred_check
          %p279 = pneg %p122
        $region38: #{tpu_custom_call.1} parent=23 // pred_check_branch
          %281 = sbr.rel (%p279) target = $region40
        $region39: #{tpu_custom_call.1} parent=23 // pred_region
          %s282 = sand.u32 %s112, 1
          %s283 = scalar_lea.sflag [#allocation9], %s282
          %s284 = sand.u32 %s112, 1
          %s285 = smul.addr %s284, 4
          %s286 = scalar_lea.vmem [#allocation8], %s285
          %s288 = ssub.s32 64, 64
          %289 = vsyncadd %s283, %s288
          %s290 = smul.addr %s24, 64
          %s291 = scalar_lea.hbm %s3, %s290
          %s293 = sshll.u32 %s286, 4
          %s294 = int_to_ptr.vmem [resolvable:$true] %s293
          %296 = dma.hbm_to_vmem [thread:$0]  %s291, 64, %s294, %s283
        $region40: #{tpu_custom_call.1} parent=23 // pred_fallthru
          _
      $region24: #{tpu_custom_call.1} parent=5 // pred_fallthru
        _
      %p297 = scmp.le.s32.totalorder 1, %s24
      %p298 = scmp.lt.s32.totalorder %s24, 3
      %p299 = pnand %p297, %p298
      %p300 = pneg %p299
      // Predicated region
      $region41: #{tpu_custom_call.1} parent=5 // pred_check
        _
      $region42: #{tpu_custom_call.1} parent=5 // pred_check_branch
        %302 = sbr.rel (%p299) target = $region44
      $region43: #{tpu_custom_call.1} parent=5 // pred_region
        %s303 = ssub.s32 %s24, 1
        %s304 = sand.u32 %s37, 1
        %s305 = scalar_lea.sflag [#allocation3], %s304
        %s306 = sand.u32 %s37, 1
        %s307 = smul.addr %s306, 4
        %s308 = scalar_lea.vmem [#allocation2], %s307
        // Predicated region
        $region45: #{tpu_custom_call.1} parent=43 // pred_check
          %p309 = pneg %p50
        $region46: #{tpu_custom_call.1} parent=43 // pred_check_branch
          %311 = sbr.rel (%p309) target = $region48
        $region47: #{tpu_custom_call.1} parent=43 // pred_region
          %312 = dma.done %s305, 64
        $region48: #{tpu_custom_call.1} parent=43 // pred_fallthru
          _
        %s313 = sand.u32 %s29, 1
        %s314 = scalar_lea.sflag [#allocation6], %s313
        %s315 = sand.u32 %s63, 1
        %s316 = smul.addr %s315, 4
        %s317 = scalar_lea.vmem [#allocation5], %s316
        // Predicated region
        $region49: #{tpu_custom_call.1} parent=43 // pred_check
          %p318 = pneg %p76
        $region50: #{tpu_custom_call.1} parent=43 // pred_check_branch
          %320 = sbr.rel (%p318) target = $region52
        $region51: #{tpu_custom_call.1} parent=43 // pred_region
          %321 = dma.done %s314, 64
        $region52: #{tpu_custom_call.1} parent=43 // pred_fallthru
          _
        %s322 = sand.u32 %s29, 1
        %s323 = scalar_lea.sflag [#allocation6], %s322
        %s324 = sand.u32 %s89, 1
        %s325 = smul.addr %s324, 64
        %s326 = scalar_lea.vmem [#allocation7], %s325
        // Predicated region
        $region53: #{tpu_custom_call.1} parent=43 // pred_check
          %p327 = pneg %p102
        $region54: #{tpu_custom_call.1} parent=43 // pred_check_branch
          %329 = sbr.rel (%p327) target = $region56
        $region55: #{tpu_custom_call.1} parent=43 // pred_region
          %330 = dma.done %s323, 1024
        $region56: #{tpu_custom_call.1} parent=43 // pred_fallthru
          _
        %s331 = sand.u32 %s115, 1
        %s332 = scalar_lea.sflag [#allocation9], %s331
        %s333 = sand.u32 %s115, 1
        %s334 = smul.addr %s333, 4
        %s335 = scalar_lea.vmem [#allocation8], %s334
        // Predicated region
        $region57: #{tpu_custom_call.1} parent=43 // pred_check
          %p336 = pneg %p128
        $region58: #{tpu_custom_call.1} parent=43 // pred_check_branch
          %338 = sbr.rel (%p336) target = $region60
        $region59: #{tpu_custom_call.1} parent=43 // pred_region
          %339 = dma.done %s332, 64
        $region60: #{tpu_custom_call.1} parent=43 // pred_fallthru
          _
        %s340 = sand.u32 %s37, 1
        %s341 = scalar_lea.sflag [#allocation3], %s340
        %s342 = sand.u32 %s37, 1
        %s343 = smul.addr %s342, 4
        %s344 = scalar_lea.vmem [#allocation2], %s343
        %p345 = pneg %p50
        %p346 = pneg %p47
        %s347 = sand.u32 %s29, 1
        %s348 = scalar_lea.sflag [#allocation6], %s347
        %s349 = sand.u32 %s63, 1
        %s350 = smul.addr %s349, 4
        %s351 = scalar_lea.vmem [#allocation5], %s350
        %p352 = pneg %p76
        %p353 = pneg %p73
        %s354 = sand.u32 %s29, 1
        %s355 = scalar_lea.sflag [#allocation6], %s354
        %s356 = sand.u32 %s89, 1
        %s357 = smul.addr %s356, 64
        %s358 = scalar_lea.vmem [#allocation7], %s357
        %p359 = pneg %p102
        %p360 = pneg %p99
        %s361 = sand.u32 %s115, 1
        %s362 = scalar_lea.sflag [#allocation9], %s361
        %s363 = sand.u32 %s115, 1
        %s364 = smul.addr %s363, 4
        %s365 = scalar_lea.vmem [#allocation8], %s364
        %p366 = pneg %p128
        %p367 = pneg %p125
        %p368 = pneg %p149
        %p369 = pneg %p146
        %p370 = pneg %p170
        %p371 = pneg %p167
        %p372 = pneg %p196
        %p373 = pneg %p193
        %s374 = sand.u32 %s183, 1
        %s375 = scalar_lea.sflag [#allocation4], %s374
        %s376 = sand.u32 %s183, 1
        %s377 = smul.addr %s376, 2
        %s378 = scalar_lea.vmem [#allocation10], %s377
        %v380 = vld [vmem:[%s326] sm:$0xf]
        %v381 = vld [vmem:[%s326 + $0x4] sm:$0xf]
        %v382 = vld [vmem:[%s326 + $0x8] sm:$0xf]
        %v383 = vld [vmem:[%s326 + $0xc] sm:$0xf]
        %v384 = vunpack.c.l.bf16 %v380
        %v385 = vunpack.c.l.bf16 %v381
        %v386 = vunpack.c.l.bf16 %v382
        %v387 = vunpack.c.l.bf16 %v383
        %v388 = vld [vmem:[%s335] sm:$0x1]
        %v389 = vlaneseq
        %v390 = vshrl.u32 %v389, 7
        %v391 = vsub.s32 0, %v390
        %v392 = vrot.slane %v388, %v391
        %v393 = vmul.f32 %v384, %v392
        %v394 = vmul.f32 %v385, %v392
        %v395 = vmul.f32 %v386, %v392
        %v396 = vmul.f32 %v387, %v392
        %s397 = scalar_lea.vmem %s326, 16 [#allocation7]
        %v398 = vld [vmem:[%s397] sm:$0xf]
        %v399 = vld [vmem:[%s397 + $0x4] sm:$0xf]
        %v400 = vld [vmem:[%s397 + $0x8] sm:$0xf]
        %v401 = vld [vmem:[%s397 + $0xc] sm:$0xf]
        %v402 = vunpack.c.l.bf16 %v398
        %v403 = vunpack.c.l.bf16 %v399
        %v404 = vunpack.c.l.bf16 %v400
        %v405 = vunpack.c.l.bf16 %v401
        %v406 = vld [vmem:[%s335 + $0x1] sm:$0x1]
        %v407 = vlaneseq
        %v408 = vshrl.u32 %v407, 7
        %v409 = vsub.s32 0, %v408
        %v410 = vrot.slane %v406, %v409
        %v411 = vmul.f32 %v402, %v410
        %v412 = vmul.f32 %v403, %v410
        %v413 = vmul.f32 %v404, %v410
        %v414 = vmul.f32 %v405, %v410
        %v415 = vadd.f32 %v393, %v411
        %v416 = vadd.f32 %v394, %v412
        %v417 = vadd.f32 %v395, %v413
        %v418 = vadd.f32 %v396, %v414
        %s419 = scalar_lea.vmem %s326, 32 [#allocation7]
        %v420 = vld [vmem:[%s419] sm:$0xf]
        %v421 = vld [vmem:[%s419 + $0x4] sm:$0xf]
        %v422 = vld [vmem:[%s419 + $0x8] sm:$0xf]
        %v423 = vld [vmem:[%s419 + $0xc] sm:$0xf]
        %v424 = vunpack.c.l.bf16 %v420
        %v425 = vunpack.c.l.bf16 %v421
        %v426 = vunpack.c.l.bf16 %v422
        %v427 = vunpack.c.l.bf16 %v423
        %v428 = vld [vmem:[%s335 + $0x2] sm:$0x1]
        %v429 = vlaneseq
        %v430 = vshrl.u32 %v429, 7
        %v431 = vsub.s32 0, %v430
        %v432 = vrot.slane %v428, %v431
        %v433 = vmul.f32 %v424, %v432
        %v434 = vmul.f32 %v425, %v432
        %v435 = vmul.f32 %v426, %v432
        %v436 = vmul.f32 %v427, %v432
        %v437 = vadd.f32 %v415, %v433
        %v438 = vadd.f32 %v416, %v434
        %v439 = vadd.f32 %v417, %v435
        %v440 = vadd.f32 %v418, %v436
        %s441 = scalar_lea.vmem %s326, 48 [#allocation7]
        %v442 = vld [vmem:[%s441] sm:$0xf]
        %v443 = vld [vmem:[%s441 + $0x4] sm:$0xf]
        %v444 = vld [vmem:[%s441 + $0x8] sm:$0xf]
        %v445 = vld [vmem:[%s441 + $0xc] sm:$0xf]
        %v446 = vunpack.c.l.bf16 %v442
        %v447 = vunpack.c.l.bf16 %v443
        %v448 = vunpack.c.l.bf16 %v444
        %v449 = vunpack.c.l.bf16 %v445
        %v450 = vld [vmem:[%s335 + $0x3] sm:$0x1]
        %v451 = vlaneseq
        %v452 = vshrl.u32 %v451, 7
        %v453 = vsub.s32 0, %v452
        %v454 = vrot.slane %v450, %v453
        %v455 = vmul.f32 %v446, %v454
        %v456 = vmul.f32 %v447, %v454
        %v457 = vmul.f32 %v448, %v454
        %v458 = vmul.f32 %v449, %v454
        %v459 = vadd.f32 %v437, %v455
        %v460 = vadd.f32 %v438, %v456
        %v461 = vadd.f32 %v439, %v457
        %v462 = vadd.f32 %v440, %v458
        %v463 = vld [vmem:[%s308] sm:$0x1]
        %v464 = vunpack.c.l.bf16 %v463
        %v465 = vld [vmem:[%s317] sm:$0x1]
        %v466 = vlaneseq
        %v467 = vshrl.u32 %v466, 7
        %v468 = vsub.s32 0, %v467
        %v469 = vrot.slane %v465, %v468
        %v470 = vmul.f32 %v464, %v469
        %s471 = scalar_lea.vmem %s308, 1 [#allocation2]
        %v472 = vld [vmem:[%s471] sm:$0x1]
        %v473 = vunpack.c.l.bf16 %v472
        %v474 = vld [vmem:[%s317 + $0x1] sm:$0x1]
        %v475 = vlaneseq
        %v476 = vshrl.u32 %v475, 7
        %v477 = vsub.s32 0, %v476
        %v478 = vrot.slane %v474, %v477
        %v479 = vmul.f32 %v473, %v478
        %v480 = vadd.f32 %v470, %v479
        %s481 = scalar_lea.vmem %s308, 2 [#allocation2]
        %v482 = vld [vmem:[%s481] sm:$0x1]
        %v483 = vunpack.c.l.bf16 %v482
        %v484 = vld [vmem:[%s317 + $0x2] sm:$0x1]
        %v485 = vlaneseq
        %v486 = vshrl.u32 %v485, 7
        %v487 = vsub.s32 0, %v486
        %v488 = vrot.slane %v484, %v487
        %v489 = vmul.f32 %v483, %v488
        %v490 = vadd.f32 %v480, %v489
        %s491 = scalar_lea.vmem %s308, 3 [#allocation2]
        %v492 = vld [vmem:[%s491] sm:$0x1]
        %v493 = vunpack.c.l.bf16 %v492
        %v494 = vld [vmem:[%s317 + $0x3] sm:$0x1]
        %v495 = vlaneseq
        %v496 = vshrl.u32 %v495, 7
        %v497 = vsub.s32 0, %v496
        %v498 = vrot.slane %v494, %v497
        %v499 = vmul.f32 %v493, %v498
        %v500 = vadd.f32 %v490, %v499
        %v501 = vld [vmem:[%s4] sm:$0x1]
        %v502 = vpack.c.bf16 %v460, %v459
        %v503 = vpack.c.bf16 %v462, %v461
        %v504 = vld [vmem:[%s5] sm:$0x3]
        %506 = vset.pattern.permute.xlu0 0
        %507 = vperm.xlu0 %506, %v504
        %v508 = vpop.permute.xlu0 %507
        %v510 = vlaneseq
        %v511 = vshrl.u32 %v510, 7
        %v512 = vsub.s32 0, %v511
        %v513 = vrot.slane %v500, %v512
        %v514 = vmul.f32 %v508, %v513
        %vm515 = vcmask 261120
        %v517 = vsel %vm515, %v501, 0
        %519 = vmatprep.subr.bf16.mxu0 0
        %520 = vmatpush1.bf16.msra.mxu0 0
        %521 = vmatprep.subr.bf16.mxu0 0
        %522 = vmatpush1.bf16.msra.mxu0 0
        %523 = vmatprep.subr.bf16.mxu0 0
        %524 = vmatpush1.bf16.msra.mxu0 0
        %525 = vmatprep.subr.bf16.mxu0 0
        %526 = vmatpush1.bf16.msra.mxu0 0
        %527 = vmatprep.subr.bf16.mxu0 0
        %528 = vmatpush1.bf16.msra.mxu0 0
        %529 = vmatprep.subr.bf16.mxu0 0
        %530 = vmatpush1.bf16.msra.mxu0 0
        %531 = vmatprep.subr.bf16.mxu0 0
        %532 = vmatpush1.bf16.msra.mxu0 %v503
        %533 = vmatprep.subr.bf16.mxu0 0
        %534 = vmatpush1.bf16.msra.mxu0 %v502
        %535 = vmatprep.subr.bf16.mxu0 0
        %536 = vmatpush2.bf16.msra.mxu0 0
        %537 = vmatprep.subr.bf16.mxu0 0
        %538 = vmatpush2.bf16.msra.mxu0 0
        %539 = vmatprep.subr.bf16.mxu0 0
        %540 = vmatpush2.bf16.msra.mxu0 0
        %541 = vmatprep.subr.bf16.mxu0 0
        %542 = vmatpush2.bf16.msra.mxu0 0
        %543 = vmatprep.subr.bf16.mxu0 0
        %544 = vmatpush2.bf16.msra.mxu0 0
        %545 = vmatprep.subr.bf16.mxu0 0
        %546 = vmatpush2.bf16.msra.mxu0 0
        %547 = vmatprep.subr.bf16.mxu0 0
        %548 = vmatpush2.bf16.msra.mxu0 0
        %549 = vmatprep.subr.bf16.mxu0 0
        %550 = vmatpush2.bf16.msra.mxu0 0
        %551 = vmatprep.mubr.bf16.mxu0 0
        %552 = vmatmul.mubr.bf16.gmra.mxu0 %v517
        %v553 = vpop.f32.mrf.mxu0
        %v554 = vadd.f32 %v514, %v553
        %v555 = vpop.f32.mrf.mxu0
        %v556 = vpop.f32.mrf.mxu0
        %v557 = vpop.f32.mrf.mxu0
        %558 = vdwg.mxu0
        %559 = vset.pattern.permute.xlu0 1
        %560 = vperm.xlu0 %559, %v504
        %v561 = vpop.permute.xlu0 %560
        %v563 = vlaneseq
        %v564 = vshrl.u32 %v563, 7
        %v565 = vsub.s32 1, %v564
        %v566 = vrot.slane %v500, %v565
        %v567 = vmul.f32 %v561, %v566
        %v568 = vadd.f32 %v554, %v567
        %569 = vst [vmem:[%s378] sm:$0x3] %v568
        %s570 = sand.u32 %s183, 1
        %s571 = scalar_lea.sflag [#allocation4], %s570
        %s572 = sand.u32 %s183, 1
        %s573 = smul.addr %s572, 2
        %s574 = scalar_lea.vmem [#allocation10], %s573
        // Predicated region
        $region61: #{tpu_custom_call.1} parent=43 // pred_check
          %p575 = pneg %p193
        $region62: #{tpu_custom_call.1} parent=43 // pred_check_branch
          %577 = sbr.rel (%p575) target = $region64
        $region63: #{tpu_custom_call.1} parent=43 // pred_region
          %s579 = ssub.s32 32, 32
          %580 = vsyncadd %s571, %s579
          %s581 = smul.addr %s29, 32
          %s582 = scalar_lea.hbm %s6, %s581
          %s584 = sshll.u32 %s574, 4
          %s585 = int_to_ptr.vmem [resolvable:$true] %s584
          %587 = dma.vmem_to_hbm [thread:$0]  %s585, 32, %s582, %s571
        $region64: #{tpu_custom_call.1} parent=43 // pred_fallthru
          _
      $region44: #{tpu_custom_call.1} parent=5 // pred_fallthru
        _
      %p588 = scmp.le.s32.totalorder 2, %s24
      // Predicated region
      $region65: #{tpu_custom_call.1} parent=5 // pred_check
        %p589 = pneg %p588
      $region66: #{tpu_custom_call.1} parent=5 // pred_check_branch
        %591 = sbr.rel (%p589) target = $region68
      $region67: #{tpu_custom_call.1} parent=5 // pred_region
        %s592 = ssub.s32 %s24, 2
        // Predicated region
        $region69: #{tpu_custom_call.1} parent=67 // pred_check
          %p593 = pneg %p199
        $region70: #{tpu_custom_call.1} parent=67 // pred_check_branch
          %595 = sbr.rel (%p593) target = $region72
        $region71: #{tpu_custom_call.1} parent=67 // pred_region
          %s596 = sand.u32 %s184, 1
          %s597 = scalar_lea.sflag [#allocation4], %s596
          %s598 = sand.u32 %s184, 1
          %s599 = smul.addr %s598, 2
          %s600 = scalar_lea.vmem [#allocation10], %s599
          %601 = dma.done %s597, 32
        $region72: #{tpu_custom_call.1} parent=67 // pred_fallthru
          _
      $region68: #{tpu_custom_call.1} parent=5 // pred_fallthru
        _
    $region6: #{tpu_custom_call.1} parent=1 // loop_footer
      %s28 = sadd.s32 1, %s24
    $region7: #{tpu_custom_call.1} parent=1 // loop_footer_branch
      %23 = sbr.rel target = $region3
    $region8: #{tpu_custom_call.1} parent=1 // loop_exit
      _
    %602 = vsyncpa [#allocation3], 1
    %s603 = scalar_lea.sflag [#allocation3], 1
    %604 = vsyncpa %s603, 1
    %605 = vsyncpa [#allocation6], 1
    %s606 = scalar_lea.sflag [#allocation6], 1
    %607 = vsyncpa %s606, 1
    %608 = vsyncpa [#allocation9], 1
    %s609 = scalar_lea.sflag [#allocation9], 1
    %610 = vsyncpa %s609, 1
    %611 = vsyncpa [#allocation4], 1
    %s612 = scalar_lea.sflag [#allocation4], 1
    %613 = vsyncpa %s612, 1

</llo_original>
